<compile_context>
chip_gen: v5e
topology: v5e:2x2
jax: 0.10.0
libtpu: 0.0.40
codegen_flags: <defaults>
</compile_context>

<pallas_src>
import jax
import jax.numpy as jnp
from jax.experimental import pallas as pl
from jax.experimental.pallas import tpu as pltpu


def _round_up(x: int, m: int) -> int:
    return ((x + m - 1) // m) * m


def _make_mlp_kernel(n_layers: int, use_bf16: bool):
    """Kernel computing the full MLP forward for one batch tile.

    Ref order: x_ref, (w_ref, b_ref) * n_layers, w_out_ref, b_out_ref, o_ref
    """

    def _mm(lhs, rhs):
        if use_bf16:
            lhs = lhs.astype(jnp.bfloat16)
            rhs = rhs.astype(jnp.bfloat16)
        return jnp.dot(lhs, rhs, preferred_element_type=jnp.float32)

    def kernel(*refs):
        x_ref = refs[0]
        o_ref = refs[-1]
        param_refs = refs[1:-1]

        h = x_ref[...]
        if h.dtype != jnp.float32:
            h = h.astype(jnp.float32)

        # Hidden layers: MXU matmul with f32 accumulation; bias add on the VPU,
        # tanh on the EUP (own bundle slot, overlaps with everything else).
        for l in range(n_layers):
            w = param_refs[2 * l][...]
            b = param_refs[2 * l + 1][...]
            h = jnp.tanh(_mm(h, w) + b)

        # Output layer: Linear with identity output activation.
        w_out = param_refs[2 * n_layers][...]
        b_out = param_refs[2 * n_layers + 1][...]
        y = _mm(h, w_out) + b_out
        o_ref[...] = y.astype(o_ref.dtype)

    return kernel


def _mlp_jnp(obs, params):
    """Plain-XLA path (small-batch bypass / VMEM-guard fallback)."""
    h = obs.astype(jnp.float32)
    for w, b in params[:-1]:
        h = jnp.tanh(h @ w + b)
    w, b = params[-1]
    return h @ w + b


def mlp_policy_forward(obs, params, *, batch_tile=None, max_batch_tile=4096,
                       min_pallas_batch=64, use_bf16=False):
    """Pallas-backed MLPPolicy.forward.

    obs:    [B, ob_dim] float32
    params: list of (W [in, out], b [1, out]) tuples, length n_layers + 1
    """
    obs = jnp.asarray(obs)
    B, ob_dim = obs.shape
    n_layers = len(params) - 1
    ac_dim = params[-1][0].shape[1]

    # ---- Small-batch bypass (get_action regime): kernel launch, 7 input DMAs
    # and pad/slice overhead dwarf the ~KFLOPs of compute per row.
    if B < min_pallas_batch:
        return _mlp_jnp(obs, params)

    flat_params = []
    for w, b in params:
        flat_params += [w, b]

    # ---- Batch tiling: one grid step whenever B fits a single tile; only
    # split when each step still gets a large (max_batch_tile-sized) tile.
    if batch_tile is None:
        if B <= max_batch_tile:
            batch_tile = _round_up(B, 8)
        else:
            num_steps = int(pl.cdiv(B, max_batch_tile))
            batch_tile = _round_up(int(pl.cdiv(B, num_steps)), 8)
    batch_tile = max(8, _round_up(int(batch_tile), 8))  # sublane multiple of 8
    num_steps = int(pl.cdiv(B, batch_tile))
    b_pad = num_steps * batch_tile

    # ---- VMEM footprint estimate (double-buffer obs/out; count weights as
    # double-buffered for a conservative bound).
    itemsize = 4
    est_bytes = (
        2 * batch_tile * ob_dim * itemsize
        + 2 * batch_tile * ac_dim * itemsize
        + 2 * sum(int(p.size) * itemsize for p in flat_params)
    )

    # Whole-network weight residency guard (v7x has only 64 MiB physical VMEM).
    # TODO(synk): tile the hidden dimension (grid over K/N + f32 accumulator
    # scratch) instead of whole-weight residency once `size` gets large.
    if est_bytes > (40 << 20):
        return _mlp_jnp(obs, params)

    obs_p = obs if b_pad == B else jnp.pad(obs, ((0, b_pad - B), (0, 0)))

    kernel = _make_mlp_kernel(n_layers, use_bf16)

    # obs / output tile over the batch; weights & biases have constant
    # index_maps so they stay resident in VMEM across all grid steps.
    in_specs = [pl.BlockSpec((batch_tile, ob_dim), lambda i: (i, 0))]
    in_specs += [pl.BlockSpec(p.shape, lambda i: (0, 0)) for p in flat_params]
    out_spec = pl.BlockSpec((batch_tile, ac_dim), lambda i: (i, 0))

    # Only raise the scoped-VMEM limit when the footprint actually needs it;
    # never set it below the platform default.
    cp_kwargs = dict(dimension_semantics=("parallel",))
    if est_bytes > (12 << 20):
        cp_kwargs["vmem_limit_bytes"] = int(min(2 * est_bytes + (1 << 20), 96 << 20))

    out = pl.pallas_call(
        kernel,
        out_shape=jax.ShapeDtypeStruct((b_pad, ac_dim), jnp.float32),
        grid_spec=pltpu.PrefetchScalarGridSpec(
            num_scalar_prefetch=0,
            grid=(num_steps,),
            in_specs=in_specs,
            out_specs=out_spec,
        ),
        compiler_params=pltpu.CompilerParams(**cp_kwargs),
    )(obs_p, *flat_params)

    # Slice off batch padding (padded rows compute tanh(bias) junk; harmless).
    return out[:B] if b_pad != B else out


def init_mlp_params(key, ob_dim, ac_dim, n_layers, size):
    """Deterministic init mimicking PyTorch nn.Linear default
    (uniform(-1/sqrt(fan_in), 1/sqrt(fan_in)) for both W and b)."""
    dims = [ob_dim] + [size] * n_layers + [ac_dim]
    params = []
    for fan_in, fan_out in zip(dims[:-1], dims[1:]):
        key, kw, kb = jax.random.split(key, 3)
        bound = 1.0 / jnp.sqrt(jnp.float32(fan_in))
        w = jax.random.uniform(
            kw, (fan_in, fan_out), jnp.float32, minval=-bound, maxval=bound
        )
        b = jax.random.uniform(
            kb, (1, fan_out), jnp.float32, minval=-bound, maxval=bound
        )
        params.append((w, b))
    return params


def mlp_reference(obs, params, n_layers):
    h = obs
    for l in range(n_layers):
        w, b = params[l]
        h = jnp.tanh(h @ w + b)
    w, b = params[n_layers]
    return h @ w + b


if __name__ == "__main__":
    # Small shapes consistent with the module's __init__:
    #   ob_dim=16, ac_dim=4, n_layers=2, size=32
    ob_dim, ac_dim, n_layers, size = 16, 4, 2, 32

    root = jax.random.PRNGKey(0)
    key_params, key_obs = jax.random.split(root)
    params = init_mlp_params(key_params, ob_dim, ac_dim, n_layers, size)

    # (batch, kwargs) cases:
    #  256  -> Pallas, single grid step (tile = 256)
    #  300  -> Pallas, single step, padded partial tile (tile = 304)
    #  1000 (max_batch_tile=256) -> Pallas, 4-step grid, weights resident
    #  16 (min_pallas_batch=0)   -> Pallas forced at small B (small-tile path)
    #  13   -> small-batch jnp bypass
    cases = [
        (256, {}),
        (300, {}),
        (1000, {"max_batch_tile": 256}),
        (16, {"min_pallas_batch": 0}),
        (13, {}),
    ]

    for batch, kwargs in cases:
        key_obs, k = jax.random.split(key_obs)
        obs = jax.random.normal(k, (batch, ob_dim), dtype=jnp.float32)

        out = jax.block_until_ready(mlp_policy_forward(obs, params, **kwargs))
        ref = mlp_reference(obs, params, n_layers)

        assert out.shape == (batch, ac_dim), (out.shape, batch, ac_dim)
        assert jnp.allclose(out, ref, atol=1e-5, rtol=1e-5), f"mismatch at B={batch}"

    # NOTE: forward() only returns the mean; Normal(mean, exp(logstd)) sampling
    # in get_action (and the Adam update / save) are outside the forward pass.
    print("KERNEL_OK")
</pallas_src>

<mosaic_0001>
module attributes {stable_mosaic.version = 11 : i64} {
  func.func @kernel(%arg0: i32, %arg1: memref<256x16xf32, #tpu.memory_space<vmem>>, %arg2: memref<16x32xf32, #tpu.memory_space<vmem>>, %arg3: memref<1x32xf32, #tpu.memory_space<vmem>>, %arg4: memref<32x32xf32, #tpu.memory_space<vmem>>, %arg5: memref<1x32xf32, #tpu.memory_space<vmem>>, %arg6: memref<32x4xf32, #tpu.memory_space<vmem>>, %arg7: memref<1x4xf32, #tpu.memory_space<vmem>>, %arg8: memref<256x4xf32, #tpu.memory_space<vmem>>) attributes {dimension_semantics = [#tpu.dimension_semantics<parallel>], iteration_bounds = array<i64: 1>, scalar_prefetch = 0 : i64, scratch_operands = 0 : i64, tpu.core_type = #tpu.core_type<tc>, window_params = [{transform_indices = @transform_0, window_bounds = array<i64: 256, 16>}, {pipeline_mode = #tpu.pipeline_mode<synchronous>, transform_indices = @transform_1, window_bounds = array<i64: 16, 32>}, {pipeline_mode = #tpu.pipeline_mode<synchronous>, transform_indices = @transform_2, window_bounds = array<i64: 1, 32>}, {pipeline_mode = #tpu.pipeline_mode<synchronous>, transform_indices = @transform_3, window_bounds = array<i64: 32, 32>}, {pipeline_mode = #tpu.pipeline_mode<synchronous>, transform_indices = @transform_4, window_bounds = array<i64: 1, 32>}, {pipeline_mode = #tpu.pipeline_mode<synchronous>, transform_indices = @transform_5, window_bounds = array<i64: 32, 4>}, {pipeline_mode = #tpu.pipeline_mode<synchronous>, transform_indices = @transform_6, window_bounds = array<i64: 1, 4>}, {transform_indices = @transform_7, window_bounds = array<i64: 256, 4>}]} {
    %c0 = arith.constant 0 : index
    %c0_0 = arith.constant 0 : index
    %0 = vector.load %arg1[%c0, %c0_0] : memref<256x16xf32, #tpu.memory_space<vmem>>, vector<256x16xf32>
    %c0_1 = arith.constant 0 : index
    %c0_2 = arith.constant 0 : index
    %1 = vector.load %arg2[%c0_1, %c0_2] : memref<16x32xf32, #tpu.memory_space<vmem>>, vector<16x32xf32>
    %c0_3 = arith.constant 0 : index
    %c0_4 = arith.constant 0 : index
    %2 = vector.load %arg3[%c0_3, %c0_4] : memref<1x32xf32, #tpu.memory_space<vmem>>, vector<1x32xf32>
    %cst = arith.constant dense<0.000000e+00> : vector<256x32xf32>
    %3 = tpu.matmul %0, %1, %cst {dimension_numbers = #tpu.dot_dimension_numbers<[1], [0], [0], [1], [0, 0, 1, 1], [], []>} : vector<256x16xf32>, vector<16x32xf32>, vector<256x32xf32> -> vector<256x32xf32>
    %4 = vector.broadcast %2 : vector<1x32xf32> to vector<256x32xf32>
    %5 = arith.addf %3, %4 : vector<256x32xf32>
    %6 = math.tanh %5 : vector<256x32xf32>
    %c0_5 = arith.constant 0 : index
    %c0_6 = arith.constant 0 : index
    %7 = vector.load %arg4[%c0_5, %c0_6] : memref<32x32xf32, #tpu.memory_space<vmem>>, vector<32x32xf32>
    %c0_7 = arith.constant 0 : index
    %c0_8 = arith.constant 0 : index
    %8 = vector.load %arg5[%c0_7, %c0_8] : memref<1x32xf32, #tpu.memory_space<vmem>>, vector<1x32xf32>
    %cst_9 = arith.constant dense<0.000000e+00> : vector<256x32xf32>
    %9 = tpu.matmul %6, %7, %cst_9 {dimension_numbers = #tpu.dot_dimension_numbers<[1], [0], [0], [1], [0, 0, 1, 1], [], []>} : vector<256x32xf32>, vector<32x32xf32>, vector<256x32xf32> -> vector<256x32xf32>
    %10 = vector.broadcast %8 : vector<1x32xf32> to vector<256x32xf32>
    %11 = arith.addf %9, %10 : vector<256x32xf32>
    %12 = math.tanh %11 : vector<256x32xf32>
    %c0_10 = arith.constant 0 : index
    %c0_11 = arith.constant 0 : index
    %13 = vector.load %arg6[%c0_10, %c0_11] : memref<32x4xf32, #tpu.memory_space<vmem>>, vector<32x4xf32>
    %c0_12 = arith.constant 0 : index
    %c0_13 = arith.constant 0 : index
    %14 = vector.load %arg7[%c0_12, %c0_13] : memref<1x4xf32, #tpu.memory_space<vmem>>, vector<1x4xf32>
    %cst_14 = arith.constant dense<0.000000e+00> : vector<256x4xf32>
    %15 = tpu.matmul %12, %13, %cst_14 {dimension_numbers = #tpu.dot_dimension_numbers<[1], [0], [0], [1], [0, 0, 1, 1], [], []>} : vector<256x32xf32>, vector<32x4xf32>, vector<256x4xf32> -> vector<256x4xf32>
    %16 = vector.broadcast %14 : vector<1x4xf32> to vector<256x4xf32>
    %17 = arith.addf %15, %16 : vector<256x4xf32>
    %c0_15 = arith.constant 0 : index
    %c0_16 = arith.constant 0 : index
    %18 = vector.load %arg8[%c0_15, %c0_16] : memref<256x4xf32, #tpu.memory_space<vmem>>, vector<256x4xf32>
    tpu.vector_store %arg8[%c0_15, %c0_16], %17 {strides = array<i32>} : memref<256x4xf32, #tpu.memory_space<vmem>>, vector<256x4xf32>,
    return
  }
  func.func @transform_0(%arg0: i32) -> (i32, i32) {
    %c0_i32 = arith.constant 0 : i32
    %c0_i32_0 = arith.constant 0 : i32
    return %arg0, %c0_i32 : i32, i32
  }
  func.func @transform_1(%arg0: i32) -> (i32, i32) {
    %c0_i32 = arith.constant 0 : i32
    %c0_i32_0 = arith.constant 0 : i32
    %c0_i32_1 = arith.constant 0 : i32
    return %c0_i32, %c0_i32_0 : i32, i32
  }
  func.func @transform_2(%arg0: i32) -> (i32, i32) {
    %c0_i32 = arith.constant 0 : i32
    %c0_i32_0 = arith.constant 0 : i32
    %c0_i32_1 = arith.constant 0 : i32
    return %c0_i32, %c0_i32_0 : i32, i32
  }
  func.func @transform_3(%arg0: i32) -> (i32, i32) {
    %c0_i32 = arith.constant 0 : i32
    %c0_i32_0 = arith.constant 0 : i32
    %c0_i32_1 = arith.constant 0 : i32
    return %c0_i32, %c0_i32_0 : i32, i32
  }
  func.func @transform_4(%arg0: i32) -> (i32, i32) {
    %c0_i32 = arith.constant 0 : i32
    %c0_i32_0 = arith.constant 0 : i32
    %c0_i32_1 = arith.constant 0 : i32
    return %c0_i32, %c0_i32_0 : i32, i32
  }
  func.func @transform_5(%arg0: i32) -> (i32, i32) {
    %c0_i32 = arith.constant 0 : i32
    %c0_i32_0 = arith.constant 0 : i32
    %c0_i32_1 = arith.constant 0 : i32
    return %c0_i32, %c0_i32_0 : i32, i32
  }
  func.func @transform_6(%arg0: i32) -> (i32, i32) {
    %c0_i32 = arith.constant 0 : i32
    %c0_i32_0 = arith.constant 0 : i32
    %c0_i32_1 = arith.constant 0 : i32
    return %c0_i32, %c0_i32_0 : i32, i32
  }
  func.func @transform_7(%arg0: i32) -> (i32, i32) {
    %c0_i32 = arith.constant 0 : i32
    %c0_i32_0 = arith.constant 0 : i32
    return %arg0, %c0_i32 : i32, i32
  }
}

</mosaic_0001>

<llo_original>
// kernel: tpu_custom_call.1
$region0: #{tpu_custom_call.1}
  #allocation0 [shape = 'u32[]', space=smem, size = 0x4, offset = 0x4, fixed_abs, tag = 'smem constant byte address 0x4 - core index']
  #allocation1 [shape = 'u32[72,128]{1,0:T(1,128)}', space=vmem, size = 0x9000, scoped, tag = 'internal scratch']
  %s0 = inlined_call_operand.vmem [shape: f32[256,16], index: 0, kind: input, shape index: {}]
  %s1 = inlined_call_operand.vmem [shape: f32[16,32], index: 1, kind: input, shape index: {}]
  %s2 = inlined_call_operand.vmem [shape: f32[1,32], index: 2, kind: input, shape index: {}]
  %s3 = inlined_call_operand.vmem [shape: f32[32,32], index: 3, kind: input, shape index: {}]
  %s4 = inlined_call_operand.vmem [shape: f32[1,32], index: 4, kind: input, shape index: {}]
  %s5 = inlined_call_operand.vmem [shape: f32[32,4], index: 5, kind: input, shape index: {}]
  %s6 = inlined_call_operand.vmem [shape: f32[1,4], index: 6, kind: input, shape index: {}]
  %s7 = inlined_call_operand.vmem [shape: f32[256,4], index: 7, kind: output, shape index: {}]
  %s8 = sld [smem:[#allocation0]]
  $region38: #{tpu_custom_call.1} parent=0
    _
  %s10 = ssub.s32 1, %s8
  %s11 = scalar_select 0, %s10, %s8
  // Predicated region
  $region2: #{tpu_custom_call.1} parent=0 // pred_check
    _
  $region3: #{tpu_custom_call.1} parent=0 // pred_check_branch
    %13 = sbr.rel (0) target = $region5
  $region4: #{tpu_custom_call.1} parent=0 // pred_region
    _
  $region5: #{tpu_custom_call.1} parent=0 // pred_fallthru
    _
  // Predicated region
  $region6: #{tpu_custom_call.1} parent=0 // pred_check
    _
  $region7: #{tpu_custom_call.1} parent=0 // pred_check_branch
    %15 = sbr.rel (0) target = $region9
  $region8: #{tpu_custom_call.1} parent=0 // pred_region
    _
  $region9: #{tpu_custom_call.1} parent=0 // pred_fallthru
    _
  // Predicated region
  $region10: #{tpu_custom_call.1} parent=0 // pred_check
    _
  $region11: #{tpu_custom_call.1} parent=0 // pred_check_branch
    %17 = sbr.rel (0) target = $region13
  $region12: #{tpu_custom_call.1} parent=0 // pred_region
    _
  $region13: #{tpu_custom_call.1} parent=0 // pred_fallthru
    _
  // Predicated region
  $region14: #{tpu_custom_call.1} parent=0 // pred_check
    _
  $region15: #{tpu_custom_call.1} parent=0 // pred_check_branch
    %19 = sbr.rel (0) target = $region17
  $region16: #{tpu_custom_call.1} parent=0 // pred_region
    _
  $region17: #{tpu_custom_call.1} parent=0 // pred_fallthru
    _
  // Predicated region
  $region18: #{tpu_custom_call.1} parent=0 // pred_check
    _
  $region19: #{tpu_custom_call.1} parent=0 // pred_check_branch
    %21 = sbr.rel (0) target = $region21
  $region20: #{tpu_custom_call.1} parent=0 // pred_region
    _
  $region21: #{tpu_custom_call.1} parent=0 // pred_fallthru
    _
  // Predicated region
  $region22: #{tpu_custom_call.1} parent=0 // pred_check
    _
  $region23: #{tpu_custom_call.1} parent=0 // pred_check_branch
    %23 = sbr.rel (0) target = $region25
  $region24: #{tpu_custom_call.1} parent=0 // pred_region
    _
  $region25: #{tpu_custom_call.1} parent=0 // pred_fallthru
    _
  // Predicated region
  $region26: #{tpu_custom_call.1} parent=0 // pred_check
    _
  $region27: #{tpu_custom_call.1} parent=0 // pred_check_branch
    %25 = sbr.rel (0) target = $region29
  $region28: #{tpu_custom_call.1} parent=0 // pred_region
    _
  $region29: #{tpu_custom_call.1} parent=0 // pred_fallthru
    _
  %v26 = vld [vmem:[%s0] sm:$0xff]
  %v27 = vld [vmem:[%s0 + $0x8] sm:$0xff]
  %v28 = vld [vmem:[%s0 + $0x10] sm:$0xff]
  %v29 = vld [vmem:[%s0 + $0x18] sm:$0xff]
  %v30 = vld [vmem:[%s0 + $0x20] sm:$0xff]
  %v31 = vld [vmem:[%s0 + $0x28] sm:$0xff]
  %v32 = vld [vmem:[%s0 + $0x30] sm:$0xff]
  %v33 = vld [vmem:[%s0 + $0x38] sm:$0xff]
  %v34 = vld [vmem:[%s0 + $0x40] sm:$0xff]
  %v35 = vld [vmem:[%s0 + $0x48] sm:$0xff]
  %v36 = vld [vmem:[%s0 + $0x50] sm:$0xff]
  %v37 = vld [vmem:[%s0 + $0x58] sm:$0xff]
  %v38 = vld [vmem:[%s0 + $0x60] sm:$0xff]
  %v39 = vld [vmem:[%s0 + $0x68] sm:$0xff]
  %v40 = vld [vmem:[%s0 + $0x70] sm:$0xff]
  %v41 = vld [vmem:[%s0 + $0x78] sm:$0xff]
  %v42 = vld [vmem:[%s0 + $0x80] sm:$0xff]
  %v43 = vld [vmem:[%s0 + $0x88] sm:$0xff]
  %v44 = vld [vmem:[%s0 + $0x90] sm:$0xff]
  %v45 = vld [vmem:[%s0 + $0x98] sm:$0xff]
  %v46 = vld [vmem:[%s0 + $0xa0] sm:$0xff]
  %v47 = vld [vmem:[%s0 + $0xa8] sm:$0xff]
  %v48 = vld [vmem:[%s0 + $0xb0] sm:$0xff]
  %v49 = vld [vmem:[%s0 + $0xb8] sm:$0xff]
  %v50 = vld [vmem:[%s0 + $0xc0] sm:$0xff]
  %v51 = vld [vmem:[%s0 + $0xc8] sm:$0xff]
  %v52 = vld [vmem:[%s0 + $0xd0] sm:$0xff]
  %v53 = vld [vmem:[%s0 + $0xd8] sm:$0xff]
  %v54 = vld [vmem:[%s0 + $0xe0] sm:$0xff]
  %v55 = vld [vmem:[%s0 + $0xe8] sm:$0xff]
  %v56 = vld [vmem:[%s0 + $0xf0] sm:$0xff]
  %v57 = vld [vmem:[%s0 + $0xf8] sm:$0xff]
  %v58 = vld [vmem:[%s1] sm:$0xff]
  %v59 = vld [vmem:[%s1 + $0x8] sm:$0xff]
  %v60 = vld [vmem:[%s2] sm:$0x1]
  %v62 = vperm.slane %v60, 0
  %vm64 = vcmask 130048
  %v66 = vsel %vm64, %v26, 0
  %v69 = vsel %vm64, %v27, 0
  %v72 = vsel %vm64, %v28, 0
  %v75 = vsel %vm64, %v29, 0
  %v78 = vsel %vm64, %v30, 0
  %v81 = vsel %vm64, %v31, 0
  %v84 = vsel %vm64, %v32, 0
  %v87 = vsel %vm64, %v33, 0
  %v90 = vsel %vm64, %v34, 0
  %v93 = vsel %vm64, %v35, 0
  %v96 = vsel %vm64, %v36, 0
  %v99 = vsel %vm64, %v37, 0
  %v102 = vsel %vm64, %v38, 0
  %v105 = vsel %vm64, %v39, 0
  %v108 = vsel %vm64, %v40, 0
  %v111 = vsel %vm64, %v41, 0
  %v114 = vsel %vm64, %v42, 0
  %v117 = vsel %vm64, %v43, 0
  %v120 = vsel %vm64, %v44, 0
  %v123 = vsel %vm64, %v45, 0
  %v126 = vsel %vm64, %v46, 0
  %v129 = vsel %vm64, %v47, 0
  %v132 = vsel %vm64, %v48, 0
  %v135 = vsel %vm64, %v49, 0
  %v138 = vsel %vm64, %v50, 0
  %v141 = vsel %vm64, %v51, 0
  %v144 = vsel %vm64, %v52, 0
  %v147 = vsel %vm64, %v53, 0
  %v150 = vsel %vm64, %v54, 0
  %v153 = vsel %vm64, %v55, 0
  %v156 = vsel %vm64, %v56, 0
  %v159 = vsel %vm64, %v57, 0
  %161 = vmatpush.msra.mxu0 0.0
  %162 = vmatpush.msra.mxu0 0.0
  %163 = vmatpush.msra.mxu0 0.0
  %164 = vmatpush.msra.mxu0 0.0
  %165 = vmatpush.msra.mxu0 0.0
  %166 = vmatpush.msra.mxu0 0.0
  %167 = vmatpush.msra.mxu0 0.0
  %168 = vmatpush.msra.mxu0 0.0
  %169 = vmatpush.msra.mxu0 0.0
  %170 = vmatpush.msra.mxu0 0.0
  %171 = vmatpush.msra.mxu0 0.0
  %172 = vmatpush.msra.mxu0 0.0
  %173 = vmatpush.msra.mxu0 0.0
  %174 = vmatpush.msra.mxu0 0.0
  %175 = vmatpush.msra.mxu0 %v59
  %176 = vmatpush.msra.mxu0 %v58
  %177 = vmatmul.f32.gmra.mxu0 %v66
  %v178 = vpop.f32.mrf.mxu0
  %v179 = vadd.f32 %v62, %v178
  %180 = vmatmul.f32.gmra.mxu0 %v69
  %v181 = vpop.f32.mrf.mxu0
  %v182 = vadd.f32 %v62, %v181
  %183 = vmatmul.f32.gmra.mxu0 %v72
  %v184 = vpop.f32.mrf.mxu0
  %v185 = vadd.f32 %v62, %v184
  %186 = vmatmul.f32.gmra.mxu0 %v75
  %v187 = vpop.f32.mrf.mxu0
  %v188 = vadd.f32 %v62, %v187
  %189 = vmatmul.f32.gmra.mxu0 %v78
  %v190 = vpop.f32.mrf.mxu0
  %v191 = vadd.f32 %v62, %v190
  %192 = vmatmul.f32.gmra.mxu0 %v81
  %v193 = vpop.f32.mrf.mxu0
  %v194 = vadd.f32 %v62, %v193
  %195 = vmatmul.f32.gmra.mxu0 %v84
  %v196 = vpop.f32.mrf.mxu0
  %v197 = vadd.f32 %v62, %v196
  %198 = vmatmul.f32.gmra.mxu0 %v87
  %v199 = vpop.f32.mrf.mxu0
  %v200 = vadd.f32 %v62, %v199
  %201 = vmatmul.f32.gmra.mxu0 %v90
  %v202 = vpop.f32.mrf.mxu0
  %v203 = vadd.f32 %v62, %v202
  %204 = vmatmul.f32.gmra.mxu0 %v93
  %v205 = vpop.f32.mrf.mxu0
  %v206 = vadd.f32 %v62, %v205
  %207 = vmatmul.f32.gmra.mxu0 %v96
  %v208 = vpop.f32.mrf.mxu0
  %v209 = vadd.f32 %v62, %v208
  %210 = vmatmul.f32.gmra.mxu0 %v99
  %v211 = vpop.f32.mrf.mxu0
  %v212 = vadd.f32 %v62, %v211
  %213 = vmatmul.f32.gmra.mxu0 %v102
  %v214 = vpop.f32.mrf.mxu0
  %v215 = vadd.f32 %v62, %v214
  %216 = vmatmul.f32.gmra.mxu0 %v105
  %v217 = vpop.f32.mrf.mxu0
  %v218 = vadd.f32 %v62, %v217
  %219 = vmatmul.f32.gmra.mxu0 %v108
  %v220 = vpop.f32.mrf.mxu0
  %v221 = vadd.f32 %v62, %v220
  %222 = vmatmul.f32.gmra.mxu0 %v111
  %v223 = vpop.f32.mrf.mxu0
  %v224 = vadd.f32 %v62, %v223
  %225 = vmatmul.f32.gmra.mxu0 %v114
  %v226 = vpop.f32.mrf.mxu0
  %v227 = vadd.f32 %v62, %v226
  %228 = vmatmul.f32.gmra.mxu0 %v117
  %v229 = vpop.f32.mrf.mxu0
  %v230 = vadd.f32 %v62, %v229
  %231 = vmatmul.f32.gmra.mxu0 %v120
  %v232 = vpop.f32.mrf.mxu0
  %v233 = vadd.f32 %v62, %v232
  %234 = vmatmul.f32.gmra.mxu0 %v123
  %v235 = vpop.f32.mrf.mxu0
  %v236 = vadd.f32 %v62, %v235
  %237 = vmatmul.f32.gmra.mxu0 %v126
  %v238 = vpop.f32.mrf.mxu0
  %v239 = vadd.f32 %v62, %v238
  %240 = vmatmul.f32.gmra.mxu0 %v129
  %v241 = vpop.f32.mrf.mxu0
  %v242 = vadd.f32 %v62, %v241
  %243 = vmatmul.f32.gmra.mxu0 %v132
  %v244 = vpop.f32.mrf.mxu0
  %v245 = vadd.f32 %v62, %v244
  %246 = vmatmul.f32.gmra.mxu0 %v135
  %v247 = vpop.f32.mrf.mxu0
  %v248 = vadd.f32 %v62, %v247
  %249 = vmatmul.f32.gmra.mxu0 %v138
  %v250 = vpop.f32.mrf.mxu0
  %v251 = vadd.f32 %v62, %v250
  %252 = vmatmul.f32.gmra.mxu0 %v141
  %v253 = vpop.f32.mrf.mxu0
  %v254 = vadd.f32 %v62, %v253
  %255 = vmatmul.f32.gmra.mxu0 %v144
  %v256 = vpop.f32.mrf.mxu0
  %v257 = vadd.f32 %v62, %v256
  %258 = vmatmul.f32.gmra.mxu0 %v147
  %v259 = vpop.f32.mrf.mxu0
  %v260 = vadd.f32 %v62, %v259
  %261 = vmatmul.f32.gmra.mxu0 %v150
  %v262 = vpop.f32.mrf.mxu0
  %v263 = vadd.f32 %v62, %v262
  %264 = vmatmul.f32.gmra.mxu0 %v153
  %v265 = vpop.f32.mrf.mxu0
  %v266 = vadd.f32 %v62, %v265
  %267 = vmatmul.f32.gmra.mxu0 %v156
  %v268 = vpop.f32.mrf.mxu0
  %v269 = vadd.f32 %v62, %v268
  %270 = vmatmul.f32.gmra.mxu0 %v159
  %v271 = vpop.f32.mrf.mxu0
  %v272 = vadd.f32 %v62, %v271
  %273 = vdwg.mxu0
  %v274 = vtanh.pop %v179
  %v275 = vtanh.pop %v182
  %v276 = vtanh.pop %v185
  %v277 = vtanh.pop %v188
  %v278 = vtanh.pop %v191
  %v279 = vtanh.pop %v194
  %v280 = vtanh.pop %v197
  %v281 = vtanh.pop %v200
  %v282 = vtanh.pop %v203
  %v283 = vtanh.pop %v206
  %v284 = vtanh.pop %v209
  %v285 = vtanh.pop %v212
  %v286 = vtanh.pop %v215
  %v287 = vtanh.pop %v218
  %v288 = vtanh.pop %v221
  %v289 = vtanh.pop %v224
  %v290 = vtanh.pop %v227
  %v291 = vtanh.pop %v230
  %v292 = vtanh.pop %v233
  %v293 = vtanh.pop %v236
  %v294 = vtanh.pop %v239
  %v295 = vtanh.pop %v242
  %v296 = vtanh.pop %v245
  %v297 = vtanh.pop %v248
  %v298 = vtanh.pop %v251
  %v299 = vtanh.pop %v254
  %v300 = vtanh.pop %v257
  %v301 = vtanh.pop %v260
  %v302 = vtanh.pop %v263
  %v303 = vtanh.pop %v266
  %v304 = vtanh.pop %v269
  %v305 = vtanh.pop %v272
  %v306 = vld [vmem:[%s3] sm:$0xff]
  %v307 = vld [vmem:[%s3 + $0x8] sm:$0xff]
  %v308 = vld [vmem:[%s3 + $0x10] sm:$0xff]
  %v309 = vld [vmem:[%s3 + $0x18] sm:$0xff]
  %v310 = vld [vmem:[%s4] sm:$0x1]
  %v312 = vperm.slane %v310, 0
  %vm314 = vcmask 261120
  %v316 = vsel %vm314, %v274, 0
  %v319 = vsel %vm314, %v275, 0
  %v322 = vsel %vm314, %v276, 0
  %v325 = vsel %vm314, %v277, 0
  %v328 = vsel %vm314, %v278, 0
  %v331 = vsel %vm314, %v279, 0
  %v334 = vsel %vm314, %v280, 0
  %v337 = vsel %vm314, %v281, 0
  %v340 = vsel %vm314, %v282, 0
  %v343 = vsel %vm314, %v283, 0
  %v346 = vsel %vm314, %v284, 0
  %v349 = vsel %vm314, %v285, 0
  %v352 = vsel %vm314, %v286, 0
  %v355 = vsel %vm314, %v287, 0
  %v358 = vsel %vm314, %v288, 0
  %v361 = vsel %vm314, %v289, 0
  %v364 = vsel %vm314, %v290, 0
  %v367 = vsel %vm314, %v291, 0
  %v370 = vsel %vm314, %v292, 0
  %v373 = vsel %vm314, %v293, 0
  %v376 = vsel %vm314, %v294, 0
  %v379 = vsel %vm314, %v295, 0
  %v382 = vsel %vm314, %v296, 0
  %v385 = vsel %vm314, %v297, 0
  %v388 = vsel %vm314, %v298, 0
  %v391 = vsel %vm314, %v299, 0
  %v394 = vsel %vm314, %v300, 0
  %v397 = vsel %vm314, %v301, 0
  %v400 = vsel %vm314, %v302, 0
  %v403 = vsel %vm314, %v303, 0
  %v406 = vsel %vm314, %v304, 0
  %v409 = vsel %vm314, %v305, 0
  %411 = vmatpush.msra.mxu0 0.0
  %412 = vmatpush.msra.mxu0 0.0
  %413 = vmatpush.msra.mxu0 0.0
  %414 = vmatpush.msra.mxu0 0.0
  %415 = vmatpush.msra.mxu0 0.0
  %416 = vmatpush.msra.mxu0 0.0
  %417 = vmatpush.msra.mxu0 0.0
  %418 = vmatpush.msra.mxu0 0.0
  %419 = vmatpush.msra.mxu0 0.0
  %420 = vmatpush.msra.mxu0 0.0
  %421 = vmatpush.msra.mxu0 0.0
  %422 = vmatpush.msra.mxu0 0.0
  %423 = vmatpush.msra.mxu0 %v309
  %424 = vmatpush.msra.mxu0 %v308
  %425 = vmatpush.msra.mxu0 %v307
  %426 = vmatpush.msra.mxu0 %v306
  %427 = vmatmul.f32.gmra.mxu0 %v316
  %v428 = vpop.f32.mrf.mxu0
  %v429 = vadd.f32 %v312, %v428
  %430 = vmatmul.f32.gmra.mxu0 %v319
  %v431 = vpop.f32.mrf.mxu0
  %v432 = vadd.f32 %v312, %v431
  %433 = vmatmul.f32.gmra.mxu0 %v322
  %v434 = vpop.f32.mrf.mxu0
  %v435 = vadd.f32 %v312, %v434
  %436 = vmatmul.f32.gmra.mxu0 %v325
  %v437 = vpop.f32.mrf.mxu0
  %v438 = vadd.f32 %v312, %v437
  %439 = vmatmul.f32.gmra.mxu0 %v328
  %v440 = vpop.f32.mrf.mxu0
  %v441 = vadd.f32 %v312, %v440
  %442 = vmatmul.f32.gmra.mxu0 %v331
  %v443 = vpop.f32.mrf.mxu0
  %v444 = vadd.f32 %v312, %v443
  %445 = vmatmul.f32.gmra.mxu0 %v334
  %v446 = vpop.f32.mrf.mxu0
  %v447 = vadd.f32 %v312, %v446
  %448 = vmatmul.f32.gmra.mxu0 %v337
  %v449 = vpop.f32.mrf.mxu0
  %v450 = vadd.f32 %v312, %v449
  %451 = vmatmul.f32.gmra.mxu0 %v340
  %v452 = vpop.f32.mrf.mxu0
  %v453 = vadd.f32 %v312, %v452
  %454 = vmatmul.f32.gmra.mxu0 %v343
  %v455 = vpop.f32.mrf.mxu0
  %v456 = vadd.f32 %v312, %v455
  %457 = vmatmul.f32.gmra.mxu0 %v346
  %v458 = vpop.f32.mrf.mxu0
  %v459 = vadd.f32 %v312, %v458
  %460 = vmatmul.f32.gmra.mxu0 %v349
  %v461 = vpop.f32.mrf.mxu0
  %v462 = vadd.f32 %v312, %v461
  %463 = vmatmul.f32.gmra.mxu0 %v352
  %v464 = vpop.f32.mrf.mxu0
  %v465 = vadd.f32 %v312, %v464
  %466 = vmatmul.f32.gmra.mxu0 %v355
  %v467 = vpop.f32.mrf.mxu0
  %v468 = vadd.f32 %v312, %v467
  %469 = vmatmul.f32.gmra.mxu0 %v358
  %v470 = vpop.f32.mrf.mxu0
  %v471 = vadd.f32 %v312, %v470
  %472 = vmatmul.f32.gmra.mxu0 %v361
  %v473 = vpop.f32.mrf.mxu0
  %v474 = vadd.f32 %v312, %v473
  %475 = vmatmul.f32.gmra.mxu0 %v364
  %v476 = vpop.f32.mrf.mxu0
  %v477 = vadd.f32 %v312, %v476
  %478 = vmatmul.f32.gmra.mxu0 %v367
  %v479 = vpop.f32.mrf.mxu0
  %v480 = vadd.f32 %v312, %v479
  %481 = vmatmul.f32.gmra.mxu0 %v370
  %v482 = vpop.f32.mrf.mxu0
  %v483 = vadd.f32 %v312, %v482
  %484 = vmatmul.f32.gmra.mxu0 %v373
  %v485 = vpop.f32.mrf.mxu0
  %v486 = vadd.f32 %v312, %v485
  %487 = vmatmul.f32.gmra.mxu0 %v376
  %v488 = vpop.f32.mrf.mxu0
  %v489 = vadd.f32 %v312, %v488
  %490 = vmatmul.f32.gmra.mxu0 %v379
  %v491 = vpop.f32.mrf.mxu0
  %v492 = vadd.f32 %v312, %v491
  %493 = vmatmul.f32.gmra.mxu0 %v382
  %v494 = vpop.f32.mrf.mxu0
  %v495 = vadd.f32 %v312, %v494
  %496 = vmatmul.f32.gmra.mxu0 %v385
  %v497 = vpop.f32.mrf.mxu0
  %v498 = vadd.f32 %v312, %v497
  %499 = vmatmul.f32.gmra.mxu0 %v388
  %v500 = vpop.f32.mrf.mxu0
  %v501 = vadd.f32 %v312, %v500
  %502 = vmatmul.f32.gmra.mxu0 %v391
  %v503 = vpop.f32.mrf.mxu0
  %v504 = vadd.f32 %v312, %v503
  %505 = vmatmul.f32.gmra.mxu0 %v394
  %v506 = vpop.f32.mrf.mxu0
  %v507 = vadd.f32 %v312, %v506
  %508 = vmatmul.f32.gmra.mxu0 %v397
  %v509 = vpop.f32.mrf.mxu0
  %v510 = vadd.f32 %v312, %v509
  %511 = vmatmul.f32.gmra.mxu0 %v400
  %v512 = vpop.f32.mrf.mxu0
  %v513 = vadd.f32 %v312, %v512
  %514 = vmatmul.f32.gmra.mxu0 %v403
  %v515 = vpop.f32.mrf.mxu0
  %v516 = vadd.f32 %v312, %v515
  %517 = vmatmul.f32.gmra.mxu0 %v406
  %v518 = vpop.f32.mrf.mxu0
  %v519 = vadd.f32 %v312, %v518
  %520 = vmatmul.f32.gmra.mxu0 %v409
  %v521 = vpop.f32.mrf.mxu0
  %v522 = vadd.f32 %v312, %v521
  %523 = vdwg.mxu0
  %v524 = vtanh.pop %v429
  %v525 = vtanh.pop %v432
  %v526 = vtanh.pop %v435
  %v527 = vtanh.pop %v438
  %v528 = vtanh.pop %v441
  %v529 = vtanh.pop %v444
  %v530 = vtanh.pop %v447
  %v531 = vtanh.pop %v450
  %v532 = vtanh.pop %v453
  %v533 = vtanh.pop %v456
  %v534 = vtanh.pop %v459
  %v535 = vtanh.pop %v462
  %v536 = vtanh.pop %v465
  %v537 = vtanh.pop %v468
  %v538 = vtanh.pop %v471
  %v539 = vtanh.pop %v474
  %v540 = vtanh.pop %v477
  %v541 = vtanh.pop %v480
  %v542 = vtanh.pop %v483
  %v543 = vtanh.pop %v486
  %v544 = vtanh.pop %v489
  %v545 = vtanh.pop %v492
  %v546 = vtanh.pop %v495
  %v547 = vtanh.pop %v498
  %v548 = vtanh.pop %v501
  %v549 = vtanh.pop %v504
  %v550 = vtanh.pop %v507
  %v551 = vtanh.pop %v510
  %v552 = vtanh.pop %v513
  %v553 = vtanh.pop %v516
  %v554 = vtanh.pop %v519
  %v555 = vtanh.pop %v522
  %v556 = vld [vmem:[%s5] sm:$0xff]
  %v557 = vld [vmem:[%s5 + $0x8] sm:$0xff]
  %v558 = vld [vmem:[%s5 + $0x10] sm:$0xff]
  %v559 = vld [vmem:[%s5 + $0x18] sm:$0xff]
  %v560 = vld [vmem:[%s6] sm:$0x1]
  %v562 = vperm.slane %v560, 0
  %v565 = vsel %vm314, %v524, 0
  %v568 = vsel %vm314, %v525, 0
  %v571 = vsel %vm314, %v526, 0
  %v574 = vsel %vm314, %v527, 0
  %v577 = vsel %vm314, %v528, 0
  %v580 = vsel %vm314, %v529, 0
  %v583 = vsel %vm314, %v530, 0
  %v586 = vsel %vm314, %v531, 0
  %v589 = vsel %vm314, %v532, 0
  %v592 = vsel %vm314, %v533, 0
  %v595 = vsel %vm314, %v534, 0
  %v598 = vsel %vm314, %v535, 0
  %v601 = vsel %vm314, %v536, 0
  %v604 = vsel %vm314, %v537, 0
  %v607 = vsel %vm314, %v538, 0
  %v610 = vsel %vm314, %v539, 0
  %v613 = vsel %vm314, %v540, 0
  %v616 = vsel %vm314, %v541, 0
  %v619 = vsel %vm314, %v542, 0
  %v622 = vsel %vm314, %v543, 0
  %v625 = vsel %vm314, %v544, 0
  %v628 = vsel %vm314, %v545, 0
  %v631 = vsel %vm314, %v546, 0
  %v634 = vsel %vm314, %v547, 0
  %v637 = vsel %vm314, %v548, 0
  %v640 = vsel %vm314, %v549, 0
  %v643 = vsel %vm314, %v550, 0
  %v646 = vsel %vm314, %v551, 0
  %v649 = vsel %vm314, %v552, 0
  %v652 = vsel %vm314, %v553, 0
  %v655 = vsel %vm314, %v554, 0
  %v658 = vsel %vm314, %v555, 0
  %660 = vmatpush.msra.mxu0 0.0
  %661 = vmatpush.msra.mxu0 0.0
  %662 = vmatpush.msra.mxu0 0.0
  %663 = vmatpush.msra.mxu0 0.0
  %664 = vmatpush.msra.mxu0 0.0
  %665 = vmatpush.msra.mxu0 0.0
  %666 = vmatpush.msra.mxu0 0.0
  %667 = vmatpush.msra.mxu0 0.0
  %668 = vmatpush.msra.mxu0 0.0
  %669 = vmatpush.msra.mxu0 0.0
  %670 = vmatpush.msra.mxu0 0.0
  %671 = vmatpush.msra.mxu0 0.0
  %672 = vmatpush.msra.mxu0 %v559
  %673 = vmatpush.msra.mxu0 %v558
  %674 = vmatpush.msra.mxu0 %v557
  %675 = vmatpush.msra.mxu0 %v556
  %676 = vmatmul.f32.gmra.mxu0 %v565
  %v677 = vpop.f32.mrf.mxu0
  %v678 = vadd.f32 %v562, %v677
  %679 = vmatmul.f32.gmra.mxu0 %v568
  %v680 = vpop.f32.mrf.mxu0
  %v681 = vadd.f32 %v562, %v680
  %682 = vmatmul.f32.gmra.mxu0 %v571
  %v683 = vpop.f32.mrf.mxu0
  %v684 = vadd.f32 %v562, %v683
  %685 = vmatmul.f32.gmra.mxu0 %v574
  %v686 = vpop.f32.mrf.mxu0
  %v687 = vadd.f32 %v562, %v686
  %688 = vmatmul.f32.gmra.mxu0 %v577
  %v689 = vpop.f32.mrf.mxu0
  %v690 = vadd.f32 %v562, %v689
  %691 = vmatmul.f32.gmra.mxu0 %v580
  %v692 = vpop.f32.mrf.mxu0
  %v693 = vadd.f32 %v562, %v692
  %694 = vmatmul.f32.gmra.mxu0 %v583
  %v695 = vpop.f32.mrf.mxu0
  %v696 = vadd.f32 %v562, %v695
  %697 = vmatmul.f32.gmra.mxu0 %v586
  %v698 = vpop.f32.mrf.mxu0
  %v699 = vadd.f32 %v562, %v698
  %700 = vmatmul.f32.gmra.mxu0 %v589
  %v701 = vpop.f32.mrf.mxu0
  %v702 = vadd.f32 %v562, %v701
  %703 = vmatmul.f32.gmra.mxu0 %v592
  %v704 = vpop.f32.mrf.mxu0
  %v705 = vadd.f32 %v562, %v704
  %706 = vmatmul.f32.gmra.mxu0 %v595
  %v707 = vpop.f32.mrf.mxu0
  %v708 = vadd.f32 %v562, %v707
  %709 = vmatmul.f32.gmra.mxu0 %v598
  %v710 = vpop.f32.mrf.mxu0
  %v711 = vadd.f32 %v562, %v710
  %712 = vmatmul.f32.gmra.mxu0 %v601
  %v713 = vpop.f32.mrf.mxu0
  %v714 = vadd.f32 %v562, %v713
  %715 = vmatmul.f32.gmra.mxu0 %v604
  %v716 = vpop.f32.mrf.mxu0
  %v717 = vadd.f32 %v562, %v716
  %718 = vmatmul.f32.gmra.mxu0 %v607
  %v719 = vpop.f32.mrf.mxu0
  %v720 = vadd.f32 %v562, %v719
  %721 = vmatmul.f32.gmra.mxu0 %v610
  %v722 = vpop.f32.mrf.mxu0
  %v723 = vadd.f32 %v562, %v722
  %724 = vmatmul.f32.gmra.mxu0 %v613
  %v725 = vpop.f32.mrf.mxu0
  %v726 = vadd.f32 %v562, %v725
  %727 = vmatmul.f32.gmra.mxu0 %v616
  %v728 = vpop.f32.mrf.mxu0
  %v729 = vadd.f32 %v562, %v728
  %730 = vmatmul.f32.gmra.mxu0 %v619
  %v731 = vpop.f32.mrf.mxu0
  %v732 = vadd.f32 %v562, %v731
  %733 = vmatmul.f32.gmra.mxu0 %v622
  %v734 = vpop.f32.mrf.mxu0
  %v735 = vadd.f32 %v562, %v734
  %736 = vmatmul.f32.gmra.mxu0 %v625
  %v737 = vpop.f32.mrf.mxu0
  %v738 = vadd.f32 %v562, %v737
  %739 = vmatmul.f32.gmra.mxu0 %v628
  %v740 = vpop.f32.mrf.mxu0
  %v741 = vadd.f32 %v562, %v740
  %742 = vmatmul.f32.gmra.mxu0 %v631
  %v743 = vpop.f32.mrf.mxu0
  %v744 = vadd.f32 %v562, %v743
  %745 = vmatmul.f32.gmra.mxu0 %v634
  %v746 = vpop.f32.mrf.mxu0
  %v747 = vadd.f32 %v562, %v746
  %748 = vmatmul.f32.gmra.mxu0 %v637
  %v749 = vpop.f32.mrf.mxu0
  %v750 = vadd.f32 %v562, %v749
  %751 = vmatmul.f32.gmra.mxu0 %v640
  %v752 = vpop.f32.mrf.mxu0
  %v753 = vadd.f32 %v562, %v752
  %754 = vmatmul.f32.gmra.mxu0 %v643
  %v755 = vpop.f32.mrf.mxu0
  %v756 = vadd.f32 %v562, %v755
  %757 = vmatmul.f32.gmra.mxu0 %v646
  %v758 = vpop.f32.mrf.mxu0
  %v759 = vadd.f32 %v562, %v758
  %760 = vmatmul.f32.gmra.mxu0 %v649
  %v761 = vpop.f32.mrf.mxu0
  %v762 = vadd.f32 %v562, %v761
  %763 = vmatmul.f32.gmra.mxu0 %v652
  %v764 = vpop.f32.mrf.mxu0
  %v765 = vadd.f32 %v562, %v764
  %766 = vmatmul.f32.gmra.mxu0 %v655
  %v767 = vpop.f32.mrf.mxu0
  %v768 = vadd.f32 %v562, %v767
  %769 = vmatmul.f32.gmra.mxu0 %v658
  %v770 = vpop.f32.mrf.mxu0
  %v771 = vadd.f32 %v562, %v770
  %772 = vdwg.mxu0
  %vm773 = vcmask 31744
  %774 = vst.msk [vmem:[%s7] sm:$0xff] %vm773, %v678
  %775 = vst.msk [vmem:[%s7 + $0x8] sm:$0xff] %vm773, %v681
  %776 = vst.msk [vmem:[%s7 + $0x10] sm:$0xff] %vm773, %v684
  %777 = vst.msk [vmem:[%s7 + $0x18] sm:$0xff] %vm773, %v687
  %778 = vst.msk [vmem:[%s7 + $0x20] sm:$0xff] %vm773, %v690
  %779 = vst.msk [vmem:[%s7 + $0x28] sm:$0xff] %vm773, %v693
  %780 = vst.msk [vmem:[%s7 + $0x30] sm:$0xff] %vm773, %v696
  %781 = vst.msk [vmem:[%s7 + $0x38] sm:$0xff] %vm773, %v699
  %782 = vst.msk [vmem:[%s7 + $0x40] sm:$0xff] %vm773, %v702
  %783 = vst.msk [vmem:[%s7 + $0x48] sm:$0xff] %vm773, %v705
  %784 = vst.msk [vmem:[%s7 + $0x50] sm:$0xff] %vm773, %v708
  %785 = vst.msk [vmem:[%s7 + $0x58] sm:$0xff] %vm773, %v711
  %786 = vst.msk [vmem:[%s7 + $0x60] sm:$0xff] %vm773, %v714
  %787 = vst.msk [vmem:[%s7 + $0x68] sm:$0xff] %vm773, %v717
  %788 = vst.msk [vmem:[%s7 + $0x70] sm:$0xff] %vm773, %v720
  %789 = vst.msk [vmem:[%s7 + $0x78] sm:$0xff] %vm773, %v723
  %790 = vst.msk [vmem:[%s7 + $0x80] sm:$0xff] %vm773, %v726
  %791 = vst.msk [vmem:[%s7 + $0x88] sm:$0xff] %vm773, %v729
  %792 = vst.msk [vmem:[%s7 + $0x90] sm:$0xff] %vm773, %v732
  %793 = vst.msk [vmem:[%s7 + $0x98] sm:$0xff] %vm773, %v735
  %794 = vst.msk [vmem:[%s7 + $0xa0] sm:$0xff] %vm773, %v738
  %795 = vst.msk [vmem:[%s7 + $0xa8] sm:$0xff] %vm773, %v741
  %796 = vst.msk [vmem:[%s7 + $0xb0] sm:$0xff] %vm773, %v744
  %797 = vst.msk [vmem:[%s7 + $0xb8] sm:$0xff] %vm773, %v747
  %798 = vst.msk [vmem:[%s7 + $0xc0] sm:$0xff] %vm773, %v750
  %799 = vst.msk [vmem:[%s7 + $0xc8] sm:$0xff] %vm773, %v753
  %800 = vst.msk [vmem:[%s7 + $0xd0] sm:$0xff] %vm773, %v756
  %801 = vst.msk [vmem:[%s7 + $0xd8] sm:$0xff] %vm773, %v759
  %802 = vst.msk [vmem:[%s7 + $0xe0] sm:$0xff] %vm773, %v762
  %803 = vst.msk [vmem:[%s7 + $0xe8] sm:$0xff] %vm773, %v765
  %804 = vst.msk [vmem:[%s7 + $0xf0] sm:$0xff] %vm773, %v768
  %805 = vst.msk [vmem:[%s7 + $0xf8] sm:$0xff] %vm773, %v771
  // Predicated region
  $region30: #{tpu_custom_call.1} parent=0 // pred_check
    _
  $region31: #{tpu_custom_call.1} parent=0 // pred_check_branch
    %807 = sbr.rel (0) target = $region33
  $region32: #{tpu_custom_call.1} parent=0 // pred_region
    _
  $region33: #{tpu_custom_call.1} parent=0 // pred_fallthru
    _
  // Predicated region
  $region34: #{tpu_custom_call.1} parent=0 // pred_check
    _
  $region35: #{tpu_custom_call.1} parent=0 // pred_check_branch
    %809 = sbr.rel (0) target = $region37
  $region36: #{tpu_custom_call.1} parent=0 // pred_region
    _
  $region37: #{tpu_custom_call.1} parent=0 // pred_fallthru
    _

</llo_original>
